<compile_context>
chip_gen: v7x
topology: tpu7x:2x2x1
jax: 0.10.0
libtpu: 0.0.40
codegen_flags: <defaults>
</compile_context>

<pallas_src>
import jax
import jax.numpy as jnp
from jax.experimental import pallas as pl
from jax.experimental.pallas import tpu as pltpu  # noqa: F401  (TPU backend)


def _ctx_attn_kernel(lat_ref, w_ref, b_ref, out_ref):
    # lat_ref : (V, B, L) float32   -- views stacked on the leading axis
    # w_ref   : (L, 2L)   float32   -- [W_mean.T | W_log_var.T] fused (in x out)
    # b_ref   : (1, 2L)   float32   -- [b_mean   | b_log_var  ] fused
    # out_ref : (B, 2L)   float32   -- [mean     | log_var    ] fused
    V = lat_ref.shape[0]
    lats = [lat_ref[v] for v in range(V)]                  # V x (B, L)

    # Numerically-stable softmax over the views axis, unrolled over (tiny) V.
    m = lats[0]
    for v in range(1, V):
        m = jnp.maximum(m, lats[v])
    exps = [jnp.exp(l - m) for l in lats]
    denom = exps[0]
    for v in range(1, V):
        denom = denom + exps[v]
    inv = pl.reciprocal(denom, approx=True)                # EUP vrcp

    # sum_v softmax_v * lat_v  ==  (sum_v exp_v * lat_v) * (1 / sum_v exp_v)
    weighted = exps[0] * lats[0]
    for v in range(1, V):
        weighted = weighted + exps[v] * lats[v]
    combined = weighted * inv                              # (B, L)

    # Single fused MXU pass for both heads + bias, one lane-dense store.
    out_ref[...] = (
        jnp.dot(combined, w_ref[...], preferred_element_type=jnp.float32)
        + b_ref[...]
    )


@jax.jit
def contextualized_attention(views, labels, w_mean, b_mean, w_log_var, b_log_var):
    """views: list/tuple of (B, L) arrays. labels unused (matches PyTorch forward)."""
    del labels  # unused in the reference forward pass
    latents = jnp.stack(views, axis=0).astype(jnp.float32)       # (V, B, L)
    V, B, L = latents.shape

    # Fuse both heads: weight (L, 2L) in (in, out) layout, bias (1, 2L).
    w_cat = jnp.concatenate(
        [jnp.transpose(w_mean), jnp.transpose(w_log_var)], axis=1
    ).astype(jnp.float32)                                        # (L, 2L)
    b_cat = jnp.concatenate([b_mean, b_log_var]).reshape(1, 2 * L).astype(jnp.float32)

    # No grid: whole-array VMEM blocks, zero per-step pipelining overhead for
    # this tiny, launch-overhead-dominated problem.
    out = pl.pallas_call(
        _ctx_attn_kernel,
        out_shape=jax.ShapeDtypeStruct((B, 2 * L), jnp.float32),
    )(latents, w_cat, b_cat)
    # TODO(synk): if B grows large, tile B on a "parallel" grid axis to engage
    # both v7x TensorCores and keep VMEM bounded for large L.
    return out[:, :L], out[:, L:]


def _reference(views, w_mean, b_mean, w_log_var, b_log_var):
    latents = jnp.stack(views, axis=1)
    attn = jax.nn.softmax(latents, axis=1)
    combined = jnp.sum(attn * latents, axis=1)
    mean = combined @ w_mean.T + b_mean
    log_var = combined @ w_log_var.T + b_log_var
    return mean, log_var


if __name__ == "__main__":
    # Small shapes consistent with the module's forward:
    #   batch B=2, number of views V=3, latent_dim L=32, context_dim=16 (unused)
    B, V, L = 2, 3, 32
    context_dim = 16

    key = jax.random.PRNGKey(0)
    k_views, k_labels, k_wm, k_bm, k_wv, k_bv = jax.random.split(key, 6)

    views = [jax.random.normal(k, (B, L), dtype=jnp.float32)
             for k in jax.random.split(k_views, V)]
    labels = jax.random.normal(k_labels, (B, context_dim), dtype=jnp.float32)

    # Deterministic nn.Linear-style init: U(-1/sqrt(L), 1/sqrt(L)), weight shape (out, in)
    bound = 1.0 / jnp.sqrt(jnp.float32(L))
    w_mean = jax.random.uniform(k_wm, (L, L), jnp.float32, -bound, bound)
    b_mean = jax.random.uniform(k_bm, (L,), jnp.float32, -bound, bound)
    w_log_var = jax.random.uniform(k_wv, (L, L), jnp.float32, -bound, bound)
    b_log_var = jax.random.uniform(k_bv, (L,), jnp.float32, -bound, bound)

    mean, log_var = contextualized_attention(
        views, labels, w_mean, b_mean, w_log_var, b_log_var)
    jax.block_until_ready((mean, log_var))

    ref_mean, ref_log_var = _reference(views, w_mean, b_mean, w_log_var, b_log_var)
    assert mean.shape == (B, L) and log_var.shape == (B, L)
    # approx=True reciprocal (EUP vrcp) has ~1e-4 relative error; tolerance set accordingly.
    assert jnp.allclose(mean, ref_mean, atol=2e-3, rtol=2e-3)
    assert jnp.allclose(log_var, ref_log_var, atol=2e-3, rtol=2e-3)

    print("KERNEL_OK")
</pallas_src>

<mosaic_0001>
module attributes {stable_mosaic.version = 11 : i64} {
  func.func @_ctx_attn_kernel(%arg0: memref<3x2x32xf32, #tpu.memory_space<vmem>>, %arg1: memref<32x64xf32, #tpu.memory_space<vmem>>, %arg2: memref<1x64xf32, #tpu.memory_space<vmem>>, %arg3: memref<2x64xf32, #tpu.memory_space<vmem>>) attributes {dimension_semantics = [], scalar_prefetch = 0 : i64, scratch_operands = 0 : i64, tpu.core_type = #tpu.core_type<tc>} {
    %c0 = arith.constant 0 : index
    %c0_0 = arith.constant 0 : index
    %c0_1 = arith.constant 0 : index
    %0 = vector.load %arg0[%c0, %c0_0, %c0_1] : memref<3x2x32xf32, #tpu.memory_space<vmem>>, vector<1x2x32xf32>
    %1 = vector.shape_cast %0 : vector<1x2x32xf32> to vector<2x32xf32>
    %c1 = arith.constant 1 : index
    %c0_2 = arith.constant 0 : index
    %c0_3 = arith.constant 0 : index
    %2 = vector.load %arg0[%c1, %c0_2, %c0_3] : memref<3x2x32xf32, #tpu.memory_space<vmem>>, vector<1x2x32xf32>
    %3 = vector.shape_cast %2 : vector<1x2x32xf32> to vector<2x32xf32>
    %c2 = arith.constant 2 : index
    %c0_4 = arith.constant 0 : index
    %c0_5 = arith.constant 0 : index
    %4 = vector.load %arg0[%c2, %c0_4, %c0_5] : memref<3x2x32xf32, #tpu.memory_space<vmem>>, vector<1x2x32xf32>
    %5 = vector.shape_cast %4 : vector<1x2x32xf32> to vector<2x32xf32>
    %6 = arith.maximumf %1, %3 : vector<2x32xf32>
    %7 = arith.maximumf %6, %5 : vector<2x32xf32>
    %8 = arith.subf %1, %7 : vector<2x32xf32>
    %9 = math.exp %8 : vector<2x32xf32>
    %10 = arith.subf %3, %7 : vector<2x32xf32>
    %11 = math.exp %10 : vector<2x32xf32>
    %12 = arith.subf %5, %7 : vector<2x32xf32>
    %13 = math.exp %12 : vector<2x32xf32>
    %14 = arith.addf %9, %11 : vector<2x32xf32>
    %15 = arith.addf %14, %13 : vector<2x32xf32>
    %16 = tpu.reciprocal %15 {approx = true} : vector<2x32xf32> -> vector<2x32xf32>
    %17 = arith.mulf %9, %1 : vector<2x32xf32>
    %18 = arith.mulf %11, %3 : vector<2x32xf32>
    %19 = arith.addf %17, %18 : vector<2x32xf32>
    %20 = arith.mulf %13, %5 : vector<2x32xf32>
    %21 = arith.addf %19, %20 : vector<2x32xf32>
    %22 = arith.mulf %21, %16 : vector<2x32xf32>
    %c0_6 = arith.constant 0 : index
    %c0_7 = arith.constant 0 : index
    %23 = vector.load %arg1[%c0_6, %c0_7] : memref<32x64xf32, #tpu.memory_space<vmem>>, vector<32x64xf32>
    %cst = arith.constant dense<0.000000e+00> : vector<2x64xf32>
    %24 = tpu.matmul %22, %23, %cst {dimension_numbers = #tpu.dot_dimension_numbers<[1], [0], [0], [1], [0, 0, 1, 1], [], []>} : vector<2x32xf32>, vector<32x64xf32>, vector<2x64xf32> -> vector<2x64xf32>
    %c0_8 = arith.constant 0 : index
    %c0_9 = arith.constant 0 : index
    %25 = vector.load %arg2[%c0_8, %c0_9] : memref<1x64xf32, #tpu.memory_space<vmem>>, vector<1x64xf32>
    %26 = vector.broadcast %25 : vector<1x64xf32> to vector<2x64xf32>
    %27 = arith.addf %24, %26 : vector<2x64xf32>
    %c0_10 = arith.constant 0 : index
    %c0_11 = arith.constant 0 : index
    %28 = vector.load %arg3[%c0_10, %c0_11] : memref<2x64xf32, #tpu.memory_space<vmem>>, vector<2x64xf32>
    tpu.vector_store %arg3[%c0_10, %c0_11], %27 {strides = array<i32>} : memref<2x64xf32, #tpu.memory_space<vmem>>, vector<2x64xf32>,
    return
  }
}

</mosaic_0001>

<llo_original>
// kernel: contextualized_attention.1
$region0: #{contextualized_attention.1}
  #allocation0 [shape = 'u32[]', space=smem, size = 0x4, offset = 0x4, fixed_abs, tag = 'smem constant byte address 0x4 - core index']
  #allocation1 [shape = 'u32[144,128]{1,0:T(1,128)}', space=vmem, size = 0x12000, scoped, tag = 'internal scratch']
  %s0 = inlined_call_operand.vmem [shape: f32[3,2,32], index: 0, kind: input, shape index: {}]
  %s1 = inlined_call_operand.vmem [shape: f32[32,64], index: 1, kind: input, shape index: {}]
  %s2 = inlined_call_operand.vmem [shape: f32[1,64], index: 2, kind: input, shape index: {}]
  %s3 = inlined_call_operand.vmem [shape: f32[2,64], index: 3, kind: output, shape index: {}]
  %s4 = sld [smem:[#allocation0]]
  $region22: #{contextualized_attention.1} parent=0
    _
  %s6 = ssub.s32 1, %s4
  %s7 = scalar_select 0, %s6, %s4
  // Predicated region
  $region2: #{contextualized_attention.1} parent=0 // pred_check
    _
  $region3: #{contextualized_attention.1} parent=0 // pred_check_branch
    %9 = sbr.rel (0) target = $region5
  $region4: #{contextualized_attention.1} parent=0 // pred_region
    _
  $region5: #{contextualized_attention.1} parent=0 // pred_fallthru
    _
  // Predicated region
  $region6: #{contextualized_attention.1} parent=0 // pred_check
    _
  $region7: #{contextualized_attention.1} parent=0 // pred_check_branch
    %11 = sbr.rel (0) target = $region9
  $region8: #{contextualized_attention.1} parent=0 // pred_region
    _
  $region9: #{contextualized_attention.1} parent=0 // pred_fallthru
    _
  // Predicated region
  $region10: #{contextualized_attention.1} parent=0 // pred_check
    _
  $region11: #{contextualized_attention.1} parent=0 // pred_check_branch
    %13 = sbr.rel (0) target = $region13
  $region12: #{contextualized_attention.1} parent=0 // pred_region
    _
  $region13: #{contextualized_attention.1} parent=0 // pred_fallthru
    _
  %v14 = vld [vmem:[%s0] sm:$0x3]
  %s15 = scalar_lea.vmem %s0, 2
  %v16 = vld [vmem:[%s15] sm:$0x3]
  %s17 = scalar_lea.vmem %s0, 4
  %v18 = vld [vmem:[%s17] sm:$0x3]
  %v19 = vmax.f32 %v14, %v16
  %v20 = vmax.f32 %v19, %v18
  %v21 = vsub.f32 %v14, %v20
  %v22 = vmul.f32 %v21, 1.442695
  %v23 = vpow.pop %v22
  %v24 = vsub.f32 %v16, %v20
  %v25 = vmul.f32 %v24, 1.442695
  %v26 = vpow.pop %v25
  %v27 = vsub.f32 %v18, %v20
  %v28 = vmul.f32 %v27, 1.442695
  %v29 = vpow.pop %v28
  %v30 = vadd.f32 %v23, %v26
  %v31 = vadd.f32 %v30, %v29
  %v32 = vrcp.pop %v31
  %v33 = vmul.f32 %v23, %v14
  %v34 = vmul.f32 %v26, %v16
  %v35 = vadd.f32 %v33, %v34
  %v36 = vmul.f32 %v29, %v18
  %v37 = vadd.f32 %v35, %v36
  %v38 = vmul.f32 %v37, %v32
  %v39 = vld [vmem:[%s1] sm:$0xff]
  %v40 = vld [vmem:[%s1 + $0x8] sm:$0xff]
  %v41 = vld [vmem:[%s1 + $0x10] sm:$0xff]
  %v42 = vld [vmem:[%s1 + $0x18] sm:$0xff]
  %v43 = vld [vmem:[%s2] sm:$0x1]
  %v45 = vlaneseq
  %v46 = vshrl.u32 %v45, 7
  %v47 = vsub.s32 0, %v46
  %v48 = vrot.slane %v43, %v47
  %vm50 = vcmask 261120
  %v52 = vsel %vm50, %v38, 0
  %54 = vmatprep.subr.mxu0 0.0
  %55 = vmatpush1.msra.mxu0 %v39
  %56 = vmatprep.subr.mxu0 0.0
  %57 = vmatpush1.msra.mxu0 %v40
  %58 = vmatprep.subr.mxu0 0.0
  %59 = vmatpush1.msra.mxu0 %v41
  %60 = vmatprep.subr.mxu0 0.0
  %61 = vmatpush1.msra.mxu0 %v42
  %62 = vmatprep.subr.mxu0 0.0
  %63 = vmatpush1.msra.mxu0 0.0
  %64 = vmatprep.subr.mxu0 0.0
  %65 = vmatpush1.msra.mxu0 0.0
  %66 = vmatprep.subr.mxu0 0.0
  %67 = vmatpush1.msra.mxu0 0.0
  %68 = vmatprep.subr.mxu0 0.0
  %69 = vmatpush1.msra.mxu0 0.0
  %70 = vmatprep.subr.mxu0 0.0
  %71 = vmatpush1.msra.mxu0 0.0
  %72 = vmatprep.subr.mxu0 0.0
  %73 = vmatpush1.msra.mxu0 0.0
  %74 = vmatprep.subr.mxu0 0.0
  %75 = vmatpush1.msra.mxu0 0.0
  %76 = vmatprep.subr.mxu0 0.0
  %77 = vmatpush1.msra.mxu0 0.0
  %78 = vmatprep.subr.mxu0 0.0
  %79 = vmatpush1.msra.mxu0 0.0
  %80 = vmatprep.subr.mxu0 0.0
  %81 = vmatpush1.msra.mxu0 0.0
  %82 = vmatprep.subr.mxu0 0.0
  %83 = vmatpush1.msra.mxu0 0.0
  %84 = vmatprep.subr.mxu0 0.0
  %85 = vmatpush1.msra.mxu0 0.0
  %86 = vmatprep.subr.mxu0 0.0
  %87 = vmatpush1.msra.mxu0 0.0
  %88 = vmatprep.subr.mxu0 0.0
  %89 = vmatpush1.msra.mxu0 0.0
  %90 = vmatprep.subr.mxu0 0.0
  %91 = vmatpush1.msra.mxu0 0.0
  %92 = vmatprep.subr.mxu0 0.0
  %93 = vmatpush1.msra.mxu0 0.0
  %94 = vmatprep.subr.mxu0 0.0
  %95 = vmatpush1.msra.mxu0 0.0
  %96 = vmatprep.subr.mxu0 0.0
  %97 = vmatpush1.msra.mxu0 0.0
  %98 = vmatprep.subr.mxu0 0.0
  %99 = vmatpush1.msra.mxu0 0.0
  %100 = vmatprep.subr.mxu0 0.0
  %101 = vmatpush1.msra.mxu0 0.0
  %102 = vmatprep.subr.mxu0 0.0
  %103 = vmatpush1.msra.mxu0 0.0
  %104 = vmatprep.subr.mxu0 0.0
  %105 = vmatpush1.msra.mxu0 0.0
  %106 = vmatprep.subr.mxu0 0.0
  %107 = vmatpush1.msra.mxu0 0.0
  %108 = vmatprep.subr.mxu0 0.0
  %109 = vmatpush1.msra.mxu0 0.0
  %110 = vmatprep.subr.mxu0 0.0
  %111 = vmatpush1.msra.mxu0 0.0
  %112 = vmatprep.subr.mxu0 0.0
  %113 = vmatpush1.msra.mxu0 0.0
  %114 = vmatprep.subr.mxu0 0.0
  %115 = vmatpush1.msra.mxu0 0.0
  %116 = vmatprep.subr.mxu0 0.0
  %117 = vmatpush1.msra.mxu0 0.0
  %118 = vmatprep.mubr.f32.mxu0 0.0
  %119 = vmatmul.mubr.f32.gmra.mrb[0].mxu0 %v52
  %v120 = vpop.f32.mrb[0].mxu0
  %v121 = vadd.f32 %v48, %v120
  %v122 = vpop.f32.mrb[0].mxu0
  %123 = vdwg.mxu0
  %vm124 = vcmask 517120
  %125 = vst.msk [vmem:[%s3] sm:$0x3] %vm124, %v121
  // Predicated region
  $region14: #{contextualized_attention.1} parent=0 // pred_check
    _
  $region15: #{contextualized_attention.1} parent=0 // pred_check_branch
    %127 = sbr.rel (0) target = $region17
  $region16: #{contextualized_attention.1} parent=0 // pred_region
    _
  $region17: #{contextualized_attention.1} parent=0 // pred_fallthru
    _
  // Predicated region
  $region18: #{contextualized_attention.1} parent=0 // pred_check
    _
  $region19: #{contextualized_attention.1} parent=0 // pred_check_branch
    %129 = sbr.rel (0) target = $region21
  $region20: #{contextualized_attention.1} parent=0 // pred_region
    _
  $region21: #{contextualized_attention.1} parent=0 // pred_fallthru
    _

</llo_original>
